<compile_context>
chip_gen: v5e
topology: v5e:2x2
jax: 0.10.0
libtpu: 0.0.40
codegen_flags: <defaults>
</compile_context>

<pallas_src>
import functools
import math

import jax
import jax.numpy as jnp
from jax.experimental import pallas as pl
from jax.experimental.pallas import tpu as pltpu


def _round_up(x, m):
    return (x + m - 1) // m * m


def _weight_drop_linear_kernel(x_ref, wt_ref, bits_ref, b_ref, o_ref, acc_ref,
                               *, thresh, apply_mask):
    k = pl.program_id(1)

    @pl.when(k == 0)
    def _():
        acc_ref[...] = jnp.zeros_like(acc_ref)

    wt = wt_ref[...]                                      # (tk, tn) == (K, N)
    if apply_mask:
        # DropConnect: keep each weight with prob (1 - dropout); mask is {0, 1}.
        # Single predicate + vselect per vreg (no convert, no extra vmul).
        wt = jnp.where(bits_ref[...] < jnp.uint32(thresh), wt, jnp.zeros_like(wt))

    # Canonical MXU orientation: contract K of x (dim 1) with K of wt (dim 0).
    # (For large layers, cast x/wt to bf16 here to hit the bf16 MXU peak.)
    acc_ref[...] += jax.lax.dot_general(
        x_ref[...], wt,
        dimension_numbers=(((1,), (0,)), ((), ())),
        preferred_element_type=jnp.float32)

    @pl.when(k == pl.num_programs(1) - 1)
    def _():
        # Fused bias add in the finalize step -> single vadd + unmasked vst.
        o_ref[...] = (acc_ref[...] + b_ref[...]).astype(o_ref.dtype)


def weight_drop_linear(x, w_raw, b, *, dropout, seed):
    """Forward pass of WeightDrop(nn.Linear(in, out), ['weight'], dropout)."""
    batch, in_f = x.shape
    out_f, in_f2 = w_raw.shape
    assert in_f == in_f2

    dropout = float(dropout)
    keep_prob = 1.0 - dropout
    apply_mask = dropout > 0.0            # exact pass-through when dropout == 0
    thresh = min(int(round(keep_prob * (2 ** 32))), 2 ** 32 - 1) if apply_mask else 0

    # Lane-dense padded layouts (zero padding does not change the matmul).
    batch_pad = _round_up(batch, 8)
    in_pad = _round_up(in_f, 128)
    out_pad = _round_up(out_f, 128)

    # Tile sizes: keep batch whole, tile out_features (parallel) and
    # in_features (reduction).  Budgets stay small enough for v7x's 64 MiB VMEM.
    tk = min(in_pad, 512)
    if in_pad % tk != 0:
        tk = 128
    tn = min(out_pad, 256)
    if out_pad % tn != 0:
        tn = 128
    n_j, n_k = out_pad // tn, in_pad // tk

    x_p = jnp.zeros((batch_pad, in_pad), x.dtype).at[:batch, :in_f].set(x)
    # Pre-transpose weight to (K, N) = (in, out) in the wrapper.
    wt_p = jnp.zeros((in_pad, out_pad), w_raw.dtype).at[:in_f, :out_f].set(w_raw.T)
    b_p = jnp.zeros((1, out_pad), b.dtype).at[0, :out_f].set(b)

    # Random bits in the same lane-dense (K, N) layout the kernel consumes.
    bits = jax.random.bits(jax.random.PRNGKey(seed), (in_pad, out_pad),
                           dtype=jnp.uint32)

    kernel = functools.partial(_weight_drop_linear_kernel,
                               thresh=thresh, apply_mask=apply_mask)

    y_pad = pl.pallas_call(
        kernel,
        out_shape=jax.ShapeDtypeStruct((batch_pad, out_pad), x.dtype),
        grid_spec=pltpu.PrefetchScalarGridSpec(
            num_scalar_prefetch=0,
            grid=(n_j, n_k),
            in_specs=[
                pl.BlockSpec((batch_pad, tk), lambda j, k: (0, k)),   # x
                pl.BlockSpec((tk, tn), lambda j, k: (k, j)),          # w^T tile
                pl.BlockSpec((tk, tn), lambda j, k: (k, j)),          # rng bits
                pl.BlockSpec((1, tn), lambda j, k: (0, j)),           # bias
            ],
            out_specs=pl.BlockSpec((batch_pad, tn), lambda j, k: (0, j)),
            scratch_shapes=[pltpu.VMEM((batch_pad, tn), jnp.float32)],
        ),
        compiler_params=pltpu.CompilerParams(
            dimension_semantics=("parallel", "arbitrary"),
        ),
    )(x_p, wt_p, bits, b_p)

    # Reference mask (same bits) for the pure-JAX check in __main__.
    mask = (bits[:in_f, :out_f] < jnp.uint32(thresh)).T.astype(w_raw.dtype) \
        if apply_mask else jnp.ones_like(w_raw)
    return y_pad[:batch, :out_f], mask


if __name__ == "__main__":
    # WeightDrop(nn.Linear(in_features=32, out_features=64), ['weight'], dropout=0.5)
    batch, in_features, out_features = 8, 32, 64
    dropout = 0.5

    key = jax.random.PRNGKey(0)
    k_w, k_b, k_x = jax.random.split(key, 3)

    # Deterministic nn.Linear-style init: U(-1/sqrt(in), 1/sqrt(in))
    bound = 1.0 / math.sqrt(in_features)
    w_raw = jax.random.uniform(k_w, (out_features, in_features),
                               dtype=jnp.float32, minval=-bound, maxval=bound)
    bias = jax.random.uniform(k_b, (out_features,),
                              dtype=jnp.float32, minval=-bound, maxval=bound)
    x = jax.random.normal(k_x, (batch, in_features), dtype=jnp.float32)

    y, mask = weight_drop_linear(x, w_raw, bias, dropout=dropout, seed=0)
    y = jax.block_until_ready(y)

    # Pure-JAX reference with the identical mask.
    y_ref = x @ (w_raw * mask).T + bias

    assert y.shape == (batch, out_features)
    assert jnp.isfinite(y).all()
    assert jnp.allclose(y, y_ref, rtol=1e-3, atol=1e-3)
    print("KERNEL_OK")
</pallas_src>

<mosaic_0001>
module attributes {stable_mosaic.version = 11 : i64} {
  func.func @_weight_drop_linear_kernel(%arg0: i32, %arg1: i32, %arg2: memref<8x128xf32, #tpu.memory_space<vmem>>, %arg3: memref<128x128xf32, #tpu.memory_space<vmem>>, %arg4: memref<128x128xi32, #tpu.memory_space<vmem>>, %arg5: memref<1x128xf32, #tpu.memory_space<vmem>>, %arg6: memref<8x128xf32, #tpu.memory_space<vmem>>, %arg7: memref<8x128xf32, #tpu.memory_space<vmem>>) attributes {dimension_semantics = [#tpu.dimension_semantics<parallel>, #tpu.dimension_semantics<arbitrary>], iteration_bounds = array<i64: 1, 1>, scalar_prefetch = 0 : i64, scratch_operands = 1 : i64, tpu.core_type = #tpu.core_type<tc>, window_params = [{transform_indices = @transform_0, window_bounds = array<i64: 8, 128>}, {transform_indices = @transform_1, window_bounds = array<i64: 128, 128>}, {transform_indices = @transform_2, window_bounds = array<i64: 128, 128>}, {transform_indices = @transform_3, window_bounds = array<i64: 1, 128>}, {transform_indices = @transform_4, window_bounds = array<i64: 8, 128>}]} {
    %c0_i32 = arith.constant 0 : i32
    %0 = arith.cmpi eq, %arg1, %c0_i32 : i32
    %1 = arith.extui %0 : i1 to i32
    %c0_i32_0 = arith.constant 0 : i32
    %2 = arith.cmpi ne, %1, %c0_i32_0 : i32
    scf.if %2 {
      %cst_13 = arith.constant 0.000000e+00 : f32
      %17 = vector.broadcast %cst_13 : f32 to vector<8x128xf32>
      %c0_14 = arith.constant 0 : index
      %c0_15 = arith.constant 0 : index
      %18 = vector.load %arg7[%c0_14, %c0_15] : memref<8x128xf32, #tpu.memory_space<vmem>>, vector<8x128xf32>
      tpu.vector_store %arg7[%c0_14, %c0_15], %17 {strides = array<i32>} : memref<8x128xf32, #tpu.memory_space<vmem>>, vector<8x128xf32>,
    } else {
    }
    %c0 = arith.constant 0 : index
    %c0_1 = arith.constant 0 : index
    %3 = vector.load %arg3[%c0, %c0_1] : memref<128x128xf32, #tpu.memory_space<vmem>>, vector<128x128xf32>
    %c0_2 = arith.constant 0 : index
    %c0_3 = arith.constant 0 : index
    %4 = vector.load %arg4[%c0_2, %c0_3] : memref<128x128xi32, #tpu.memory_space<vmem>>, vector<128x128xi32>
    %c-2147483648_i32 = arith.constant -2147483648 : i32
    %5 = vector.broadcast %c-2147483648_i32 : i32 to vector<128x128xi32>
    %6 = arith.cmpi ult, %4, %5 : vector<128x128xi32>
    %cst = arith.constant 0.000000e+00 : f32
    %7 = vector.broadcast %cst : f32 to vector<128x128xf32>
    %8 = arith.select %6, %3, %7 : vector<128x128xi1>, vector<128x128xf32>
    %c0_4 = arith.constant 0 : index
    %c0_5 = arith.constant 0 : index
    %9 = vector.load %arg7[%c0_4, %c0_5] : memref<8x128xf32, #tpu.memory_space<vmem>>, vector<8x128xf32>
    %c0_6 = arith.constant 0 : index
    %c0_7 = arith.constant 0 : index
    %10 = vector.load %arg2[%c0_6, %c0_7] : memref<8x128xf32, #tpu.memory_space<vmem>>, vector<8x128xf32>
    %cst_8 = arith.constant dense<0.000000e+00> : vector<8x128xf32>
    %11 = tpu.matmul %10, %8, %cst_8 {dimension_numbers = #tpu.dot_dimension_numbers<[1], [0], [0], [1], [0, 0, 1, 1], [], []>} : vector<8x128xf32>, vector<128x128xf32>, vector<8x128xf32> -> vector<8x128xf32>
    %12 = arith.addf %9, %11 : vector<8x128xf32>
    %c0_9 = arith.constant 0 : index
    %c0_10 = arith.constant 0 : index
    %13 = vector.load %arg7[%c0_9, %c0_10] : memref<8x128xf32, #tpu.memory_space<vmem>>, vector<8x128xf32>
    tpu.vector_store %arg7[%c0_9, %c0_10], %12 {strides = array<i32>} : memref<8x128xf32, #tpu.memory_space<vmem>>, vector<8x128xf32>,
    %c0_i32_11 = arith.constant 0 : i32
    %14 = arith.cmpi eq, %arg1, %c0_i32_11 : i32
    %15 = arith.extui %14 : i1 to i32
    %c0_i32_12 = arith.constant 0 : i32
    %16 = arith.cmpi ne, %15, %c0_i32_12 : i32
    scf.if %16 {
      %c0_13 = arith.constant 0 : index
      %c0_14 = arith.constant 0 : index
      %17 = vector.load %arg7[%c0_13, %c0_14] : memref<8x128xf32, #tpu.memory_space<vmem>>, vector<8x128xf32>
      %c0_15 = arith.constant 0 : index
      %c0_16 = arith.constant 0 : index
      %18 = vector.load %arg5[%c0_15, %c0_16] : memref<1x128xf32, #tpu.memory_space<vmem>>, vector<1x128xf32>
      %19 = vector.broadcast %18 : vector<1x128xf32> to vector<8x128xf32>
      %20 = arith.addf %17, %19 : vector<8x128xf32>
      %c0_17 = arith.constant 0 : index
      %c0_18 = arith.constant 0 : index
      %21 = vector.load %arg6[%c0_17, %c0_18] : memref<8x128xf32, #tpu.memory_space<vmem>>, vector<8x128xf32>
      tpu.vector_store %arg6[%c0_17, %c0_18], %20 {strides = array<i32>} : memref<8x128xf32, #tpu.memory_space<vmem>>, vector<8x128xf32>,
    } else {
    }
    return
  }
  func.func @transform_0(%arg0: i32, %arg1: i32) -> (i32, i32) {
    %c0_i32 = arith.constant 0 : i32
    %c0_i32_0 = arith.constant 0 : i32
    return %c0_i32, %arg1 : i32, i32
  }
  func.func @transform_1(%arg0: i32, %arg1: i32) -> (i32, i32) {
    %c0_i32 = arith.constant 0 : i32
    return %arg1, %arg0 : i32, i32
  }
  func.func @transform_2(%arg0: i32, %arg1: i32) -> (i32, i32) {
    %c0_i32 = arith.constant 0 : i32
    return %arg1, %arg0 : i32, i32
  }
  func.func @transform_3(%arg0: i32, %arg1: i32) -> (i32, i32) {
    %c0_i32 = arith.constant 0 : i32
    %c0_i32_0 = arith.constant 0 : i32
    return %c0_i32, %arg0 : i32, i32
  }
  func.func @transform_4(%arg0: i32, %arg1: i32) -> (i32, i32) {
    %c0_i32 = arith.constant 0 : i32
    %c0_i32_0 = arith.constant 0 : i32
    return %c0_i32, %arg0 : i32, i32
  }
}

</mosaic_0001>

<llo_original>
// kernel: tpu_custom_call.1
$region0: #{tpu_custom_call.1}
  #allocation0 [shape = 'u32[]', space=smem, size = 0x4, offset = 0x4, fixed_abs, tag = 'smem constant byte address 0x4 - core index']
  #allocation1 [shape = 'u32[72,128]{1,0:T(1,128)}', space=vmem, size = 0x9000, scoped, tag = 'internal scratch']
  #allocation2 [shape = 'f32[8,128]{1,0:T(8,128)}', space=vmem, size = 0x1000, scoped, tag = 'scratch operand']
  %s0 = inlined_call_operand.hbm [shape: f32[8,128], index: 0, kind: input, shape index: {}]
  %s1 = inlined_call_operand.hbm [shape: f32[128,128], index: 1, kind: input, shape index: {}]
  %s2 = inlined_call_operand.hbm [shape: u32[128,128], index: 2, kind: input, shape index: {}]
  %s3 = inlined_call_operand.vmem [shape: f32[1,128], index: 3, kind: input, shape index: {}]
  %s4 = inlined_call_operand.hbm [shape: f32[8,128], index: 4, kind: output, shape index: {}]
  %s5 = sld [smem:[#allocation0]]
  $region46: #{tpu_custom_call.1} parent=0
    _
  %s7 = ssub.s32 1, %s5
  %s8 = scalar_select 0, %s7, %s5
  $region1: #{tpu_custom_call.1} parent=0
    #allocation3 [shape = 'u8[4096]{0}', space=vmem, size = 0x1000, scoped, tag = 'input window, operand 0, single buffered']
    #allocation4 [shape = 's32[1]{0}', space=sflag, size = 0x4, scoped, tag = 'scoped memory for tpu_custom_call.1']
    #allocation5 [shape = 's32[1]{0}', space=sflag, size = 0x4, scoped, tag = 'scoped memory for tpu_custom_call.1']
    #allocation6 [shape = 'u8[65536]{0}', space=vmem, size = 0x10000, scoped, tag = 'input window, operand 1, single buffered']
    #allocation7 [shape = 's32[1]{0}', space=sflag, size = 0x4, scoped, tag = 'scoped memory for tpu_custom_call.1']
    #allocation8 [shape = 'u8[65536]{0}', space=vmem, size = 0x10000, scoped, tag = 'input window, operand 2, single buffered']
    #allocation9 [shape = 'u8[4096]{0}', space=vmem, size = 0x1000, scoped, tag = 'output window, operand 0, single buffered']
    %9 = vsyncpa [#allocation4], 0
    %10 = vsyncpa [#allocation7], 0
    %11 = vsyncpa [#allocation5], 0
    // Predicated region
    $region2: #{tpu_custom_call.1} parent=1 // pred_check
      _
    $region3: #{tpu_custom_call.1} parent=1 // pred_check_branch
      %13 = sbr.rel (0) target = $region5
    $region4: #{tpu_custom_call.1} parent=1 // pred_region
      %15 = vsyncadd [#allocation4], 0
      %s17 = sshll.u32 %s0, 4
      %s18 = int_to_ptr.hbm [resolvable:$true] %s17
      %s19 = sshll.u32 [#allocation3], 4
      %s20 = int_to_ptr.vmem [resolvable:$true] %s19
      %22 = dma.hbm_to_vmem [thread:$0]  %s18, 128, %s20, [#allocation4]
    $region5: #{tpu_custom_call.1} parent=1 // pred_fallthru
      _
    // Predicated region
    $region6: #{tpu_custom_call.1} parent=1 // pred_check
      _
    $region7: #{tpu_custom_call.1} parent=1 // pred_check_branch
      %24 = sbr.rel (0) target = $region9
    $region8: #{tpu_custom_call.1} parent=1 // pred_region
      %26 = vsyncadd [#allocation7], 0
      %s27 = sshll.u32 %s1, 4
      %s28 = int_to_ptr.hbm [resolvable:$true] %s27
      %s29 = sshll.u32 [#allocation6], 4
      %s30 = int_to_ptr.vmem [resolvable:$true] %s29
      %35 = dma.hbm_to_vmem [thread:$0]  %s28, 2048, %s30, [#allocation7], 128, 128, 8
    $region9: #{tpu_custom_call.1} parent=1 // pred_fallthru
      _
    // Predicated region
    $region10: #{tpu_custom_call.1} parent=1 // pred_check
      _
    $region11: #{tpu_custom_call.1} parent=1 // pred_check_branch
      %37 = sbr.rel (0) target = $region13
    $region12: #{tpu_custom_call.1} parent=1 // pred_region
      %39 = vsyncadd [#allocation7], 0
      %s40 = sshll.u32 %s2, 4
      %s41 = int_to_ptr.hbm [resolvable:$true] %s40
      %s42 = sshll.u32 [#allocation8], 4
      %s43 = int_to_ptr.vmem [resolvable:$true] %s42
      %48 = dma.hbm_to_vmem [thread:$0]  %s41, 2048, %s43, [#allocation7], 128, 128, 8
    $region13: #{tpu_custom_call.1} parent=1 // pred_fallthru
      _
    // Predicated region
    $region14: #{tpu_custom_call.1} parent=1 // pred_check
      _
    $region15: #{tpu_custom_call.1} parent=1 // pred_check_branch
      %50 = sbr.rel (0) target = $region17
    $region16: #{tpu_custom_call.1} parent=1 // pred_region
      _
    $region17: #{tpu_custom_call.1} parent=1 // pred_fallthru
      _
    // Predicated region
    $region18: #{tpu_custom_call.1} parent=1 // pred_check
      _
    $region19: #{tpu_custom_call.1} parent=1 // pred_check_branch
      %52 = sbr.rel (0) target = $region21
    $region20: #{tpu_custom_call.1} parent=1 // pred_region
      %54 = dma.done [#allocation4], 128
    $region21: #{tpu_custom_call.1} parent=1 // pred_fallthru
      _
    // Predicated region
    $region22: #{tpu_custom_call.1} parent=1 // pred_check
      _
    $region23: #{tpu_custom_call.1} parent=1 // pred_check_branch
      %56 = sbr.rel (0) target = $region25
    $region24: #{tpu_custom_call.1} parent=1 // pred_region
      %58 = dma.done [#allocation7], 2048
    $region25: #{tpu_custom_call.1} parent=1 // pred_fallthru
      _
    // Predicated region
    $region26: #{tpu_custom_call.1} parent=1 // pred_check
      _
    $region27: #{tpu_custom_call.1} parent=1 // pred_check_branch
      %60 = sbr.rel (0) target = $region29
    $region28: #{tpu_custom_call.1} parent=1 // pred_region
      %62 = dma.done [#allocation7], 2048
    $region29: #{tpu_custom_call.1} parent=1 // pred_fallthru
      _
    %p63 = scmp.eq.s32.totalorder 0, 0
    // Predicated region
    $region30: #{tpu_custom_call.1} parent=1 // pred_check
      %p64 = pneg %p63
    $region31: #{tpu_custom_call.1} parent=1 // pred_check_branch
      %66 = sbr.rel (%p64) target = $region33
    $region32: #{tpu_custom_call.1} parent=1 // pred_region
      %67 = vst [vmem:[#allocation2] sm:$0xff] 0.0
    $region33: #{tpu_custom_call.1} parent=1 // pred_fallthru
      _
    %v68 = vld [vmem:[#allocation6] sm:$0xff]
    %v69 = vld [vmem:[#allocation6 + $0x8] sm:$0xff]
    %v70 = vld [vmem:[#allocation6 + $0x10] sm:$0xff]
    %v71 = vld [vmem:[#allocation6 + $0x18] sm:$0xff]
    %v72 = vld [vmem:[#allocation6 + $0x20] sm:$0xff]
    %v73 = vld [vmem:[#allocation6 + $0x28] sm:$0xff]
    %v74 = vld [vmem:[#allocation6 + $0x30] sm:$0xff]
    %v75 = vld [vmem:[#allocation6 + $0x38] sm:$0xff]
    %v76 = vld [vmem:[#allocation6 + $0x40] sm:$0xff]
    %v77 = vld [vmem:[#allocation6 + $0x48] sm:$0xff]
    %v78 = vld [vmem:[#allocation6 + $0x50] sm:$0xff]
    %v79 = vld [vmem:[#allocation6 + $0x58] sm:$0xff]
    %v80 = vld [vmem:[#allocation6 + $0x60] sm:$0xff]
    %v81 = vld [vmem:[#allocation6 + $0x68] sm:$0xff]
    %v82 = vld [vmem:[#allocation6 + $0x70] sm:$0xff]
    %v83 = vld [vmem:[#allocation6 + $0x78] sm:$0xff]
    %v84 = vld [vmem:[#allocation8] sm:$0xff]
    %v85 = vld [vmem:[#allocation8 + $0x8] sm:$0xff]
    %v86 = vld [vmem:[#allocation8 + $0x10] sm:$0xff]
    %v87 = vld [vmem:[#allocation8 + $0x18] sm:$0xff]
    %v88 = vld [vmem:[#allocation8 + $0x20] sm:$0xff]
    %v89 = vld [vmem:[#allocation8 + $0x28] sm:$0xff]
    %v90 = vld [vmem:[#allocation8 + $0x30] sm:$0xff]
    %v91 = vld [vmem:[#allocation8 + $0x38] sm:$0xff]
    %v92 = vld [vmem:[#allocation8 + $0x40] sm:$0xff]
    %v93 = vld [vmem:[#allocation8 + $0x48] sm:$0xff]
    %v94 = vld [vmem:[#allocation8 + $0x50] sm:$0xff]
    %v95 = vld [vmem:[#allocation8 + $0x58] sm:$0xff]
    %v96 = vld [vmem:[#allocation8 + $0x60] sm:$0xff]
    %v97 = vld [vmem:[#allocation8 + $0x68] sm:$0xff]
    %v98 = vld [vmem:[#allocation8 + $0x70] sm:$0xff]
    %v99 = vld [vmem:[#allocation8 + $0x78] sm:$0xff]
    %v100 = vadd.s32 %v84, 2147483648
    %vm102 = vcmp.lt.s32.totalorder %v100, 0
    %v103 = vadd.s32 %v85, 2147483648
    %vm105 = vcmp.lt.s32.totalorder %v103, 0
    %v106 = vadd.s32 %v86, 2147483648
    %vm108 = vcmp.lt.s32.totalorder %v106, 0
    %v109 = vadd.s32 %v87, 2147483648
    %vm111 = vcmp.lt.s32.totalorder %v109, 0
    %v112 = vadd.s32 %v88, 2147483648
    %vm114 = vcmp.lt.s32.totalorder %v112, 0
    %v115 = vadd.s32 %v89, 2147483648
    %vm117 = vcmp.lt.s32.totalorder %v115, 0
    %v118 = vadd.s32 %v90, 2147483648
    %vm120 = vcmp.lt.s32.totalorder %v118, 0
    %v121 = vadd.s32 %v91, 2147483648
    %vm123 = vcmp.lt.s32.totalorder %v121, 0
    %v124 = vadd.s32 %v92, 2147483648
    %vm126 = vcmp.lt.s32.totalorder %v124, 0
    %v127 = vadd.s32 %v93, 2147483648
    %vm129 = vcmp.lt.s32.totalorder %v127, 0
    %v130 = vadd.s32 %v94, 2147483648
    %vm132 = vcmp.lt.s32.totalorder %v130, 0
    %v133 = vadd.s32 %v95, 2147483648
    %vm135 = vcmp.lt.s32.totalorder %v133, 0
    %v136 = vadd.s32 %v96, 2147483648
    %vm138 = vcmp.lt.s32.totalorder %v136, 0
    %v139 = vadd.s32 %v97, 2147483648
    %vm141 = vcmp.lt.s32.totalorder %v139, 0
    %v142 = vadd.s32 %v98, 2147483648
    %vm144 = vcmp.lt.s32.totalorder %v142, 0
    %v145 = vadd.s32 %v99, 2147483648
    %vm147 = vcmp.lt.s32.totalorder %v145, 0
    %v148 = vsel %vm102, %v68, 0.0
    %v149 = vsel %vm105, %v69, 0.0
    %v150 = vsel %vm108, %v70, 0.0
    %v151 = vsel %vm111, %v71, 0.0
    %v152 = vsel %vm114, %v72, 0.0
    %v153 = vsel %vm117, %v73, 0.0
    %v154 = vsel %vm120, %v74, 0.0
    %v155 = vsel %vm123, %v75, 0.0
    %v156 = vsel %vm126, %v76, 0.0
    %v157 = vsel %vm129, %v77, 0.0
    %v158 = vsel %vm132, %v78, 0.0
    %v159 = vsel %vm135, %v79, 0.0
    %v160 = vsel %vm138, %v80, 0.0
    %v161 = vsel %vm141, %v81, 0.0
    %v162 = vsel %vm144, %v82, 0.0
    %v163 = vsel %vm147, %v83, 0.0
    %v164 = vld [vmem:[#allocation2] sm:$0xff]
    %v165 = vld [vmem:[#allocation3] sm:$0xff]
    %166 = vmatpush.msra.mxu0 %v163
    %167 = vmatpush.msra.mxu0 %v162
    %168 = vmatpush.msra.mxu0 %v161
    %169 = vmatpush.msra.mxu0 %v160
    %170 = vmatpush.msra.mxu0 %v159
    %171 = vmatpush.msra.mxu0 %v158
    %172 = vmatpush.msra.mxu0 %v157
    %173 = vmatpush.msra.mxu0 %v156
    %174 = vmatpush.msra.mxu0 %v155
    %175 = vmatpush.msra.mxu0 %v154
    %176 = vmatpush.msra.mxu0 %v153
    %177 = vmatpush.msra.mxu0 %v152
    %178 = vmatpush.msra.mxu0 %v151
    %179 = vmatpush.msra.mxu0 %v150
    %180 = vmatpush.msra.mxu0 %v149
    %181 = vmatpush.msra.mxu0 %v148
    %182 = vmatmul.f32.gmra.mxu0 %v165
    %v183 = vpop.f32.mrf.mxu0
    %v184 = vadd.f32 0.0, %v183
    %185 = vdwg.mxu0
    %v186 = vadd.f32 %v164, %v184
    %187 = vst [vmem:[#allocation2] sm:$0xff] %v186
    // Predicated region
    $region34: #{tpu_custom_call.1} parent=1 // pred_check
      %p188 = pneg %p63
    $region35: #{tpu_custom_call.1} parent=1 // pred_check_branch
      %190 = sbr.rel (%p188) target = $region37
    $region36: #{tpu_custom_call.1} parent=1 // pred_region
      %v191 = vld [vmem:[#allocation2] sm:$0xff]
      %v192 = vld [vmem:[%s3] sm:$0x1]
      %v194 = vperm.slane %v192, 0
      %v196 = vadd.f32 %v191, %v194
      %197 = vst [vmem:[#allocation9] sm:$0xff] %v196
    $region37: #{tpu_custom_call.1} parent=1 // pred_fallthru
      _
    // Predicated region
    $region38: #{tpu_custom_call.1} parent=1 // pred_check
      _
    $region39: #{tpu_custom_call.1} parent=1 // pred_check_branch
      %199 = sbr.rel (0) target = $region41
    $region40: #{tpu_custom_call.1} parent=1 // pred_region
      %201 = vsyncadd [#allocation5], 0
      %s203 = sshll.u32 [#allocation9], 4
      %s204 = int_to_ptr.vmem [resolvable:$true] %s203
      %s205 = sshll.u32 %s4, 4
      %s206 = int_to_ptr.hbm [resolvable:$true] %s205
      %208 = dma.vmem_to_hbm [thread:$0]  %s204, 128, %s206, [#allocation5]
    $region41: #{tpu_custom_call.1} parent=1 // pred_fallthru
      _
    // Predicated region
    $region42: #{tpu_custom_call.1} parent=1 // pred_check
      _
    $region43: #{tpu_custom_call.1} parent=1 // pred_check_branch
      %210 = sbr.rel (0) target = $region45
    $region44: #{tpu_custom_call.1} parent=1 // pred_region
      %212 = dma.done [#allocation5], 128
    $region45: #{tpu_custom_call.1} parent=1 // pred_fallthru
      _
    %213 = vsyncpa [#allocation4], 1
    %214 = vsyncpa [#allocation7], 1
    %215 = vsyncpa [#allocation5], 1

</llo_original>
